<compile_context>
chip_gen: v7x
topology: tpu7x:2x2x1
jax: 0.10.0
libtpu: 0.0.40
codegen_flags: <defaults>
</compile_context>

<pallas_src>
import functools

import jax
import jax.numpy as jnp
from jax.experimental import pallas as pl
from jax.experimental.pallas import tpu as pltpu


# ------------------------------ fused kernel --------------------------------

def _fused_forward_kernel(lhs_ref, wband_ref, b1_ref, wfc_ref, bfc_ref, o_ref,
                          *, h_img, c1):
    # lhs_ref  : (B_tile*H, 3*W*Cin_pad)  bf16/f32; per output row h the lanes hold the
    #                                      (zero-padded) input rows h-1 | h | h+1
    # wband_ref: (3*W*Cin_pad, W*C1)       banded conv1 weights, all 3 kh taps stacked on K
    # b1_ref   : (1, W*C1)                 conv1 bias tiled over w
    # wfc_ref  : (2, H, W*C1)              fc weights scattered onto the un-compressed pool grid
    # bfc_ref  : (1, W*C1)                 fc bias in lanes 0..1, zeros elsewhere
    # o_ref    : (B_tile, W*C1)            lane-dense output; logits live in lanes 0..1
    m = lhs_ref.shape[0]
    wc1 = wband_ref.shape[1]
    bt = m // h_img

    # ---- conv1 (3x3, pad=1) + bias + ReLU: one K=3*W*Cin MXU matmul, f32 accumulation ----
    acc = jnp.dot(lhs_ref[...], wband_ref[...], preferred_element_type=jnp.float32)
    h1 = jnp.maximum(acc + b1_ref[...], 0.0)                       # (M, W*C1) f32

    # ---- 2x2 / stride-2 max pool, kept "un-compressed" ----
    # The valid pooled value for image b, (ph, pw, c) lives at row b*H + 2*ph,
    # lane 2*pw*C1 + c; every other position holds a finite don't-care value that the
    # scattered fc weights zero out (row/lane wraparound only lands on don't-care rows).
    hpool = jnp.maximum(h1, pltpu.roll(h1, shift=m - 1, axis=0))          # rows h, h+1
    wpool = jnp.maximum(hpool, pltpu.roll(hpool, shift=wc1 - c1, axis=1))  # cols w, w+1

    # ---- fc epilogue (out_features=2): per-image masked multiply+reduce ----
    wp3 = wpool.reshape(bt, h_img, wc1)                            # free leading-dim split
    t0 = jnp.sum(wp3 * wfc_ref[0][None], axis=1)                   # (B_tile, W*C1)
    t1 = jnp.sum(wp3 * wfc_ref[1][None], axis=1)
    f0 = jnp.sum(t0, axis=1, keepdims=True)                        # (B_tile, 1)
    f1 = jnp.sum(t1, axis=1, keepdims=True)

    lane = jax.lax.broadcasted_iota(jnp.int32, (bt, wc1), 1)
    out = jnp.where(lane == 0, f0, jnp.where(lane == 1, f1, 0.0)) + bfc_ref[...]
    o_ref[...] = out.astype(o_ref.dtype)                           # full-width (B_tile,128) store


def _choose_batch_tile(n, h, target_m=256):
    """Largest divisor of n with B*H <= target_m, preferring >=2 grid steps (v7x megacore)."""
    divs = [d for d in range(1, n + 1) if n % d == 0]
    fit = [d for d in divs if d * h <= target_m] or [1]
    bt = max(fit)
    if n // bt < 2:
        smaller = [d for d in divs if n // d >= 2]
        if smaller:
            bt = max(smaller)
    return bt


def _make_forward(h_img, w_img, cin, cin_pad, c1, compute_dtype):
    wcin = w_img * cin_pad
    wc1 = w_img * c1

    @jax.jit
    def forward(x_nchw, wband3, b1row, wfc, bfc_row):
        n = x_nchw.shape[0]
        b_tile = _choose_batch_tile(n, h_img)          # trace-time (shapes are static under jit)
        m_tile = b_tile * h_img
        kernel = functools.partial(_fused_forward_kernel, h_img=h_img, c1=c1)

        # NCHW -> NHWC, zero-pad H by 1 on both sides (per-image conv halo) and Cin -> Cin_pad,
        # then build the 3-tap LHS (rows h-1 | h | h+1 on the lane axis) and cast to the MXU
        # operand dtype once, wrapper-side.
        x_nhwc = jnp.transpose(x_nchw, (0, 2, 3, 1))
        x_nhwc = jnp.pad(x_nhwc, ((0, 0), (1, 1), (0, 0), (0, cin_pad - cin)))
        x_rows = x_nhwc.reshape(n, h_img + 2, wcin)
        lhs = jnp.concatenate(
            [x_rows[:, 0:h_img], x_rows[:, 1:h_img + 1], x_rows[:, 2:h_img + 2]], axis=2)
        lhs = lhs.reshape(n * h_img, 3 * wcin).astype(compute_dtype)

        out = pl.pallas_call(
            kernel,
            grid=(n // b_tile,),
            in_specs=[
                pl.BlockSpec((m_tile, 3 * wcin), lambda i: (i, 0)),   # B_tile images per step
                pl.BlockSpec(wband3.shape, lambda i: (0, 0)),         # weights stay VMEM-resident
                pl.BlockSpec(b1row.shape, lambda i: (0, 0)),
                pl.BlockSpec(wfc.shape, lambda i: (0, 0, 0)),
                pl.BlockSpec(bfc_row.shape, lambda i: (0, 0)),
            ],
            out_specs=pl.BlockSpec((b_tile, wc1), lambda i: (i, 0)),  # lane-dense output block
            out_shape=jax.ShapeDtypeStruct((n, wc1), jnp.float32),
            compiler_params=pltpu.CompilerParams(
                dimension_semantics=("parallel",)),    # batch tiles sharded across TCs on v7x
        )(lhs, wband3, b1row, wfc, bfc_row)
        return out[:, :2]                              # logits live in lanes 0..1

    return forward


# ------------------------------- the module ----------------------------------

class NNConvolucionalPallas:
    """Pallas re-implementation of NNConvolucional's forward pass.

    Matches the PyTorch forward exactly:
        x = relu(conv1(x)); X = relu(conv2(x))   # X is unused (dead) -> not computed
        x = maxpool2x2(x);  x = flatten(x);  x = fc(x)
    The torch module hard-codes fc in_features=100*100*16; here it is scaled to
    (H//2)*(W//2)*capa1 so the small test shapes are self-consistent.
    """

    def __init__(self, entradas, capa1, capa2, H, W, key, compute_dtype=jnp.bfloat16):
        k1, k2, k3, k4, k5, k6 = jax.random.split(key, 6)
        self.compute_dtype = compute_dtype
        # Parameters in PyTorch conventions (conv OIHW, linear (out, in) over NCHW flatten).
        self.w1_oihw = 0.1 * jax.random.normal(k1, (capa1, entradas, 3, 3), jnp.float32)
        self.b1 = 0.1 * jax.random.normal(k2, (capa1,), jnp.float32)
        # conv2 parameters exist for parity with the torch module, but its output is dead
        # in the original forward, so the compute is intentionally dropped.
        self.w2_oihw = 0.1 * jax.random.normal(k3, (capa2, capa1, 3, 3), jnp.float32)
        self.b2 = 0.1 * jax.random.normal(k4, (capa2,), jnp.float32)
        Hp, Wp = H // 2, W // 2
        in_features = Hp * Wp * capa1
        self.fc_w = 0.05 * jax.random.normal(k5, (2, in_features), jnp.float32)
        self.fc_b = 0.05 * jax.random.normal(k6, (2,), jnp.float32)

        # ---- hoisted, one-time weight re-layouts into kernel-side formats ----
        # Zero-pad Cin so each per-tap K chunk is a whole number of 128-lane groups.
        cin_pad = entradas
        while (W * cin_pad) % 128 != 0 and cin_pad < entradas + 8:
            cin_pad += 1
        self._cin = entradas
        self._cin_pad = cin_pad

        # Banded conv weights, one band per kh tap, stacked along K:
        #   band_kh[(w+dw)*Cin_pad + ci, w*C1 + co] = w1[co, ci, kh, dw+1]
        # (rows for out-of-range w+dw are simply absent => W-direction zero padding).
        w_hwio = jnp.transpose(self.w1_oihw, (2, 3, 1, 0))               # (kh, kw, Cin, C1)
        w_hwio = jnp.pad(w_hwio, ((0, 0), (0, 0), (0, cin_pad - entradas), (0, 0)))
        bands = []
        for kh in range(3):
            band = sum(jnp.kron(jnp.eye(W, W, k=-(kw - 1), dtype=jnp.float32), w_hwio[kh, kw])
                       for kw in range(3))
            bands.append(band)                                           # (W*Cin_pad, W*C1)
        self.wband3 = jnp.concatenate(bands, axis=0).astype(compute_dtype)  # (3*W*Cin_pad, W*C1)
        self.b1row = jnp.tile(self.b1, W).reshape(1, W * capa1)          # (1, W*C1) f32

        # FC weights scattered to the un-compressed pooled grid (zeros at don't-care
        # positions), in torch's NCHW flatten order (c, ph, pw).
        fc_dense = jnp.transpose(self.fc_w.reshape(2, capa1, Hp, Wp), (0, 2, 3, 1))
        wfc = jnp.zeros((2, Hp, Wp, 2, capa1), jnp.float32).at[:, :, :, 0, :].set(fc_dense)
        wfc = wfc.reshape(2, Hp, W * capa1)
        wfc = jnp.zeros((2, Hp, 2, W * capa1), jnp.float32).at[:, :, 0, :].set(wfc)
        self.wfc = wfc.reshape(2, H, W * capa1)                          # (2, H, W*C1) f32
        # FC bias on the lane-dense output row (lanes 0..1 hold the two logits).
        self.bfc_row = jnp.zeros((1, W * capa1), jnp.float32).at[0, :2].set(self.fc_b)

        self._forward = _make_forward(H, W, entradas, cin_pad, capa1, compute_dtype)

    def forward(self, x_nchw):
        return self._forward(x_nchw, self.wband3, self.b1row, self.wfc, self.bfc_row)


# ------------------------------ pure-JAX reference ----------------------------

def _reference_forward(x_nchw, w1_oihw, b1, fc_w, fc_b, op_dtype=jnp.float32):
    """XLA reference mirroring the PyTorch forward. Conv operands are quantized to
    `op_dtype` (matching the kernel's MXU operand dtype) but all math runs in f32,
    so the comparison isolates accumulation-order differences only."""
    xq = x_nchw.astype(op_dtype).astype(jnp.float32)
    wq = w1_oihw.astype(op_dtype).astype(jnp.float32)
    y = jax.lax.conv_general_dilated(
        xq, wq, window_strides=(1, 1), padding=((1, 1), (1, 1)),
        dimension_numbers=("NCHW", "OIHW", "NCHW"),
        precision=jax.lax.Precision.HIGHEST)
    y = jnp.maximum(y + b1[None, :, None, None], 0.0)
    p = jax.lax.reduce_window(y, -jnp.inf, jax.lax.max,
                              (1, 1, 2, 2), (1, 1, 2, 2), "VALID")
    return jnp.dot(p.reshape(p.shape[0], -1), fc_w.T,
                   precision=jax.lax.Precision.HIGHEST) + fc_b


# --------------------------------- main ---------------------------------------

if __name__ == "__main__":
    key = jax.random.PRNGKey(0)
    kx, kp = jax.random.split(key)

    N, Cin, H, W = 16, 4, 16, 16         # small synthetic NCHW input
    capa1, capa2 = 8, 8                  # W*capa1 = 128 -> fully lane-dense conv/pool/out slabs

    x = jax.random.normal(kx, (N, Cin, H, W), dtype=jnp.float32)
    model = NNConvolucionalPallas(Cin, capa1, capa2, H, W, kp)   # bf16 MXU operands by default

    out = model.forward(x)
    jax.block_until_ready(out)
    assert out.shape == (N, 2) and out.dtype == jnp.float32

    ref = _reference_forward(x, model.w1_oihw, model.b1, model.fc_w, model.fc_b,
                             op_dtype=model.compute_dtype)
    assert jnp.allclose(out, ref, atol=2e-3, rtol=2e-3), (out, ref)

    print("KERNEL_OK")
</pallas_src>

<mosaic_0001>
module attributes {stable_mosaic.version = 11 : i64} {
  func.func @_fused_forward_kernel(%arg0: i32, %arg1: memref<128x384xbf16, #tpu.memory_space<vmem>>, %arg2: memref<384x128xbf16, #tpu.memory_space<vmem>>, %arg3: memref<1x128xf32, #tpu.memory_space<vmem>>, %arg4: memref<2x16x128xf32, #tpu.memory_space<vmem>>, %arg5: memref<1x128xf32, #tpu.memory_space<vmem>>, %arg6: memref<8x128xf32, #tpu.memory_space<vmem>>) attributes {dimension_semantics = [#tpu.dimension_semantics<parallel>], iteration_bounds = array<i64: 2>, scalar_prefetch = 0 : i64, scratch_operands = 0 : i64, tpu.core_type = #tpu.core_type<tc>, window_params = [{transform_indices = @transform_0, window_bounds = array<i64: 128, 384>}, {pipeline_mode = #tpu.pipeline_mode<synchronous>, transform_indices = @transform_1, window_bounds = array<i64: 384, 128>}, {pipeline_mode = #tpu.pipeline_mode<synchronous>, transform_indices = @transform_2, window_bounds = array<i64: 1, 128>}, {pipeline_mode = #tpu.pipeline_mode<synchronous>, transform_indices = @transform_3, window_bounds = array<i64: 2, 16, 128>}, {pipeline_mode = #tpu.pipeline_mode<synchronous>, transform_indices = @transform_4, window_bounds = array<i64: 1, 128>}, {transform_indices = @transform_5, window_bounds = array<i64: 8, 128>}]} {
    %c0 = arith.constant 0 : index
    %c0_0 = arith.constant 0 : index
    %0 = vector.load %arg1[%c0, %c0_0] : memref<128x384xbf16, #tpu.memory_space<vmem>>, vector<128x384xbf16>
    %c0_1 = arith.constant 0 : index
    %c0_2 = arith.constant 0 : index
    %1 = vector.load %arg2[%c0_1, %c0_2] : memref<384x128xbf16, #tpu.memory_space<vmem>>, vector<384x128xbf16>
    %cst = arith.constant dense<0.000000e+00> : vector<128x128xf32>
    %2 = tpu.matmul %0, %1, %cst {dimension_numbers = #tpu.dot_dimension_numbers<[1], [0], [0], [1], [0, 0, 1, 1], [], []>} : vector<128x384xbf16>, vector<384x128xbf16>, vector<128x128xf32> -> vector<128x128xf32>
    %c0_3 = arith.constant 0 : index
    %c0_4 = arith.constant 0 : index
    %3 = vector.load %arg3[%c0_3, %c0_4] : memref<1x128xf32, #tpu.memory_space<vmem>>, vector<1x128xf32>
    %4 = vector.broadcast %3 : vector<1x128xf32> to vector<128x128xf32>
    %5 = arith.addf %2, %4 : vector<128x128xf32>
    %cst_5 = arith.constant 0.000000e+00 : f32
    %6 = vector.broadcast %cst_5 : f32 to vector<128x128xf32>
    %7 = arith.maximumf %5, %6 : vector<128x128xf32>
    %c127_i32 = arith.constant 127 : i32
    %8 = tpu.dynamic_rotate %7 by %c127_i32 dim 0 : vector<128x128xf32>, i32 -> vector<128x128xf32>
    %9 = arith.maximumf %7, %8 : vector<128x128xf32>
    %c120_i32 = arith.constant 120 : i32
    %10 = tpu.dynamic_rotate %9 by %c120_i32 dim 1 : vector<128x128xf32>, i32 -> vector<128x128xf32>
    %11 = arith.maximumf %9, %10 : vector<128x128xf32>
    %12 = vector.shape_cast %11 : vector<128x128xf32> to vector<8x16x128xf32>
    %c0_6 = arith.constant 0 : index
    %c0_7 = arith.constant 0 : index
    %c0_8 = arith.constant 0 : index
    %13 = vector.load %arg4[%c0_6, %c0_7, %c0_8] : memref<2x16x128xf32, #tpu.memory_space<vmem>>, vector<1x16x128xf32>
    %14 = vector.shape_cast %13 : vector<1x16x128xf32> to vector<16x128xf32>
    %15 = vector.shape_cast %14 : vector<16x128xf32> to vector<1x16x128xf32>
    %16 = vector.broadcast %15 : vector<1x16x128xf32> to vector<8x16x128xf32>
    %17 = arith.mulf %12, %16 : vector<8x16x128xf32>
    %cst_9 = arith.constant dense<0.000000e+00> : vector<8x128xf32>
    %18 = vector.multi_reduction <add>, %17, %cst_9 [1] : vector<8x16x128xf32> to vector<8x128xf32>
    %c1 = arith.constant 1 : index
    %c0_10 = arith.constant 0 : index
    %c0_11 = arith.constant 0 : index
    %19 = vector.load %arg4[%c1, %c0_10, %c0_11] : memref<2x16x128xf32, #tpu.memory_space<vmem>>, vector<1x16x128xf32>
    %20 = vector.shape_cast %19 : vector<1x16x128xf32> to vector<16x128xf32>
    %21 = vector.shape_cast %20 : vector<16x128xf32> to vector<1x16x128xf32>
    %22 = vector.broadcast %21 : vector<1x16x128xf32> to vector<8x16x128xf32>
    %23 = arith.mulf %12, %22 : vector<8x16x128xf32>
    %cst_12 = arith.constant dense<0.000000e+00> : vector<8x128xf32>
    %24 = vector.multi_reduction <add>, %23, %cst_12 [1] : vector<8x16x128xf32> to vector<8x128xf32>
    %cst_13 = arith.constant dense<0.000000e+00> : vector<8xf32>
    %25 = vector.multi_reduction <add>, %18, %cst_13 [1] : vector<8x128xf32> to vector<8xf32>
    %26 = vector.shape_cast %25 : vector<8xf32> to vector<8x1xf32>
    %cst_14 = arith.constant dense<0.000000e+00> : vector<8xf32>
    %27 = vector.multi_reduction <add>, %24, %cst_14 [1] : vector<8x128xf32> to vector<8xf32>
    %28 = vector.shape_cast %27 : vector<8xf32> to vector<8x1xf32>
    %29 = tpu.iota {dimensions = array<i32: 1>} : vector<8x128xi32>
    %c0_i32 = arith.constant 0 : i32
    %30 = vector.broadcast %c0_i32 : i32 to vector<8x128xi32>
    %31 = arith.cmpi eq, %29, %30 : vector<8x128xi32>
    %c1_i32 = arith.constant 1 : i32
    %32 = vector.broadcast %c1_i32 : i32 to vector<8x128xi32>
    %33 = arith.cmpi eq, %29, %32 : vector<8x128xi32>
    %cst_15 = arith.constant 0.000000e+00 : f32
    %34 = vector.shape_cast %28 : vector<8x1xf32> to vector<8x1xf32>
    %35 = vector.broadcast %34 : vector<8x1xf32> to vector<8x128xf32>
    %36 = vector.broadcast %cst_15 : f32 to vector<8x128xf32>
    %37 = arith.select %33, %35, %36 : vector<8x128xi1>, vector<8x128xf32>
    %38 = vector.shape_cast %26 : vector<8x1xf32> to vector<8x1xf32>
    %39 = vector.broadcast %38 : vector<8x1xf32> to vector<8x128xf32>
    %40 = arith.select %31, %39, %37 : vector<8x128xi1>, vector<8x128xf32>
    %c0_16 = arith.constant 0 : index
    %c0_17 = arith.constant 0 : index
    %41 = vector.load %arg5[%c0_16, %c0_17] : memref<1x128xf32, #tpu.memory_space<vmem>>, vector<1x128xf32>
    %42 = vector.broadcast %41 : vector<1x128xf32> to vector<8x128xf32>
    %43 = arith.addf %40, %42 : vector<8x128xf32>
    %c0_18 = arith.constant 0 : index
    %c0_19 = arith.constant 0 : index
    %44 = vector.load %arg6[%c0_18, %c0_19] : memref<8x128xf32, #tpu.memory_space<vmem>>, vector<8x128xf32>
    tpu.vector_store %arg6[%c0_18, %c0_19], %43 {strides = array<i32>} : memref<8x128xf32, #tpu.memory_space<vmem>>, vector<8x128xf32>,
    return
  }
  func.func @transform_0(%arg0: i32) -> (i32, i32) {
    %c0_i32 = arith.constant 0 : i32
    %c0_i32_0 = arith.constant 0 : i32
    return %arg0, %c0_i32 : i32, i32
  }
  func.func @transform_1(%arg0: i32) -> (i32, i32) {
    %c0_i32 = arith.constant 0 : i32
    %c0_i32_0 = arith.constant 0 : i32
    %c0_i32_1 = arith.constant 0 : i32
    return %c0_i32, %c0_i32_0 : i32, i32
  }
  func.func @transform_2(%arg0: i32) -> (i32, i32) {
    %c0_i32 = arith.constant 0 : i32
    %c0_i32_0 = arith.constant 0 : i32
    %c0_i32_1 = arith.constant 0 : i32
    return %c0_i32, %c0_i32_0 : i32, i32
  }
  func.func @transform_3(%arg0: i32) -> (i32, i32, i32) {
    %c0_i32 = arith.constant 0 : i32
    %c0_i32_0 = arith.constant 0 : i32
    %c0_i32_1 = arith.constant 0 : i32
    %c0_i32_2 = arith.constant 0 : i32
    return %c0_i32, %c0_i32_0, %c0_i32_1 : i32, i32, i32
  }
  func.func @transform_4(%arg0: i32) -> (i32, i32) {
    %c0_i32 = arith.constant 0 : i32
    %c0_i32_0 = arith.constant 0 : i32
    %c0_i32_1 = arith.constant 0 : i32
    return %c0_i32, %c0_i32_0 : i32, i32
  }
  func.func @transform_5(%arg0: i32) -> (i32, i32) {
    %c0_i32 = arith.constant 0 : i32
    %c0_i32_0 = arith.constant 0 : i32
    return %arg0, %c0_i32 : i32, i32
  }
}

</mosaic_0001>

<llo_original>
// kernel: forward.1
$region0: #{forward.1}
  #allocation0 [shape = 'u32[]', space=smem, size = 0x4, offset = 0x4, fixed_abs, tag = 'smem constant byte address 0x4 - core index']
  #allocation1 [shape = 'u32[144,128]{1,0:T(1,128)}', space=vmem, size = 0x12000, scoped, tag = 'internal scratch']
  %s0 = inlined_call_operand.vmem [shape: bf16[256,384], index: 0, kind: input, shape index: {}]
  %s1 = inlined_call_operand.vmem [shape: bf16[384,128], index: 1, kind: input, shape index: {}]
  %s2 = inlined_call_operand.vmem [shape: f32[1,128], index: 2, kind: input, shape index: {}]
  %s3 = inlined_call_operand.vmem [shape: f32[2,16,128], index: 3, kind: input, shape index: {}]
  %s4 = inlined_call_operand.vmem [shape: f32[1,128], index: 4, kind: input, shape index: {}]
  %s5 = inlined_call_operand.vmem [shape: f32[16,128], index: 5, kind: output, shape index: {}]
  %s6 = sld [smem:[#allocation0]]
  $region53: #{forward.1} parent=0
    _
  %s8 = ssub.s32 1, %s6
  %s9 = scalar_select 0, %s8, %s6
  loop: start=0, step=1, limit=4
  $region2: #{forward.1} parent=0 // loop_pre_header
    _
  $region3: #{forward.1} parent=0 // loop_header
    %s11 = sphi 0, %s15
    %p12 = scmp.ge.s32.totalorder %s11, 4
    %s21 = sphi 0, %s23
    %s24 = sphi 0, %s21
    %s25 = sphi 0, %s24
    %s41 = sphi 0, %s25
    %s45 = sphi 0, %s45
    %s47 = sphi 0, %s45
    %s48 = sphi 0, %s47
    %s62 = sphi 0, %s48
    %s66 = sphi 0, %s66
    %s68 = sphi 0, %s66
    %s69 = sphi 0, %s68
    %s83 = sphi 0, %s69
    %s87 = sphi 0, %s87
    %s89 = sphi 0, %s87
    %s90 = sphi 0, %s89
    %s104 = sphi 0, %s90
    %s108 = sphi 0, %s108
    %s110 = sphi 0, %s108
    %s111 = sphi 0, %s110
    %s125 = sphi 0, %s111
    %s131 = sphi 0, %s133
    %s134 = sphi 0, %s131
    %s135 = sphi 0, %s134
    %s151 = sphi 0, %s135
  $region4: #{forward.1} parent=0 // loop_header_branch
    %14 = sbr.rel (%p12) target = $region8
  $region5: #{forward.1} parent=0 // loop_body
    %s16 = ssub.s32 %s11, 1
    %s17 = ssub.s32 %s11, 2
    %s18 = sadd.s32 %s11, 1
    %s19 = ssub.s32 %s11, %s18
    %p20 = scmp.eq.s32.totalorder %s19, 0
    %s22 = sadd.s32 %s21, 1
    %s23 = scalar_select %p20, %s21, %s22
    %p26 = pneg %p20
    %p27 = scmp.eq.s32.totalorder %s11, 1
    %p28 = por %p26, %p27
    %p29 = scmp.ne.s32.totalorder %s21, %s24
    %p30 = scmp.eq.s32.totalorder %s11, 0
    %p31 = por %p29, %p30
    %p32 = scmp.ne.s32.totalorder %s21, %s24
    %p33 = scmp.eq.s32.totalorder %s16, 1
    %p34 = por %p32, %p33
    %p35 = scmp.ne.s32.totalorder %s24, %s25
    %p36 = scmp.eq.s32.totalorder %s16, 0
    %p37 = por %p35, %p36
    %p38 = scmp.ne.s32.totalorder %s24, %s25
    %p39 = scmp.eq.s32.totalorder %s17, 1
    %p40 = por %p38, %p39
    %p42 = scmp.ne.s32.totalorder %s25, %s41
    %p43 = scmp.eq.s32.totalorder %s17, 0
    %p44 = por %p42, %p43
    %s46 = sadd.s32 %s45, 1
    %p49 = scmp.eq.s32.totalorder %s11, 1
    %p50 = scmp.ne.s32.totalorder %s45, %s47
    %p51 = scmp.eq.s32.totalorder %s11, 0
    %p52 = por %p50, %p51
    %p53 = scmp.ne.s32.totalorder %s45, %s47
    %p54 = scmp.eq.s32.totalorder %s16, 1
    %p55 = por %p53, %p54
    %p56 = scmp.ne.s32.totalorder %s47, %s48
    %p57 = scmp.eq.s32.totalorder %s16, 0
    %p58 = por %p56, %p57
    %p59 = scmp.ne.s32.totalorder %s47, %s48
    %p60 = scmp.eq.s32.totalorder %s17, 1
    %p61 = por %p59, %p60
    %p63 = scmp.ne.s32.totalorder %s48, %s62
    %p64 = scmp.eq.s32.totalorder %s17, 0
    %p65 = por %p63, %p64
    %s67 = sadd.s32 %s66, 1
    %p70 = scmp.eq.s32.totalorder %s11, 1
    %p71 = scmp.ne.s32.totalorder %s66, %s68
    %p72 = scmp.eq.s32.totalorder %s11, 0
    %p73 = por %p71, %p72
    %p74 = scmp.ne.s32.totalorder %s66, %s68
    %p75 = scmp.eq.s32.totalorder %s16, 1
    %p76 = por %p74, %p75
    %p77 = scmp.ne.s32.totalorder %s68, %s69
    %p78 = scmp.eq.s32.totalorder %s16, 0
    %p79 = por %p77, %p78
    %p80 = scmp.ne.s32.totalorder %s68, %s69
    %p81 = scmp.eq.s32.totalorder %s17, 1
    %p82 = por %p80, %p81
    %p84 = scmp.ne.s32.totalorder %s69, %s83
    %p85 = scmp.eq.s32.totalorder %s17, 0
    %p86 = por %p84, %p85
    %s88 = sadd.s32 %s87, 1
    %p91 = scmp.eq.s32.totalorder %s11, 1
    %p92 = scmp.ne.s32.totalorder %s87, %s89
    %p93 = scmp.eq.s32.totalorder %s11, 0
    %p94 = por %p92, %p93
    %p95 = scmp.ne.s32.totalorder %s87, %s89
    %p96 = scmp.eq.s32.totalorder %s16, 1
    %p97 = por %p95, %p96
    %p98 = scmp.ne.s32.totalorder %s89, %s90
    %p99 = scmp.eq.s32.totalorder %s16, 0
    %p100 = por %p98, %p99
    %p101 = scmp.ne.s32.totalorder %s89, %s90
    %p102 = scmp.eq.s32.totalorder %s17, 1
    %p103 = por %p101, %p102
    %p105 = scmp.ne.s32.totalorder %s90, %s104
    %p106 = scmp.eq.s32.totalorder %s17, 0
    %p107 = por %p105, %p106
    %s109 = sadd.s32 %s108, 1
    %p112 = scmp.eq.s32.totalorder %s11, 1
    %p113 = scmp.ne.s32.totalorder %s108, %s110
    %p114 = scmp.eq.s32.totalorder %s11, 0
    %p115 = por %p113, %p114
    %p116 = scmp.ne.s32.totalorder %s108, %s110
    %p117 = scmp.eq.s32.totalorder %s16, 1
    %p118 = por %p116, %p117
    %p119 = scmp.ne.s32.totalorder %s110, %s111
    %p120 = scmp.eq.s32.totalorder %s16, 0
    %p121 = por %p119, %p120
    %p122 = scmp.ne.s32.totalorder %s110, %s111
    %p123 = scmp.eq.s32.totalorder %s17, 1
    %p124 = por %p122, %p123
    %p126 = scmp.ne.s32.totalorder %s111, %s125
    %p127 = scmp.eq.s32.totalorder %s17, 0
    %p128 = por %p126, %p127
    %s129 = ssub.s32 %s11, %s18
    %p130 = scmp.eq.s32.totalorder %s129, 0
    %s132 = sadd.s32 %s131, 1
    %s133 = scalar_select %p130, %s131, %s132
    %p136 = pneg %p130
    %p137 = scmp.eq.s32.totalorder %s11, 1
    %p138 = por %p136, %p137
    %p139 = scmp.ne.s32.totalorder %s131, %s134
    %p140 = scmp.eq.s32.totalorder %s11, 0
    %p141 = por %p139, %p140
    %p142 = scmp.ne.s32.totalorder %s131, %s134
    %p143 = scmp.eq.s32.totalorder %s16, 1
    %p144 = por %p142, %p143
    %p145 = scmp.ne.s32.totalorder %s134, %s135
    %p146 = scmp.eq.s32.totalorder %s16, 0
    %p147 = por %p145, %p146
    %p148 = scmp.ne.s32.totalorder %s134, %s135
    %p149 = scmp.eq.s32.totalorder %s17, 1
    %p150 = por %p148, %p149
    %p152 = scmp.ne.s32.totalorder %s135, %s151
    %p153 = scmp.eq.s32.totalorder %s17, 0
    %p154 = por %p152, %p153
    %p155 = scmp.le.s32.totalorder 1, %s11
    %p156 = scmp.lt.s32.totalorder %s11, 3
    %p157 = pnand %p155, %p156
    %p158 = pneg %p157
    // Predicated region
    $region9: #{forward.1} parent=5 // pred_check
      _
    $region10: #{forward.1} parent=5 // pred_check_branch
      %160 = sbr.rel (%p157) target = $region12
    $region11: #{forward.1} parent=5 // pred_region
      %s161 = ssub.s32 %s11, 1
      // Predicated region
      $region13: #{forward.1} parent=11 // pred_check
        %p162 = pneg %p58
      $region14: #{forward.1} parent=11 // pred_check_branch
        %164 = sbr.rel (%p162) target = $region16
      $region15: #{forward.1} parent=11 // pred_region
        _
      $region16: #{forward.1} parent=11 // pred_fallthru
        _
      // Predicated region
      $region17: #{forward.1} parent=11 // pred_check
        %p165 = pneg %p79
      $region18: #{forward.1} parent=11 // pred_check_branch
        %167 = sbr.rel (%p165) target = $region20
      $region19: #{forward.1} parent=11 // pred_region
        _
      $region20: #{forward.1} parent=11 // pred_fallthru
        _
      // Predicated region
      $region21: #{forward.1} parent=11 // pred_check
        %p168 = pneg %p100
      $region22: #{forward.1} parent=11 // pred_check_branch
        %170 = sbr.rel (%p168) target = $region24
      $region23: #{forward.1} parent=11 // pred_region
        _
      $region24: #{forward.1} parent=11 // pred_fallthru
        _
      // Predicated region
      $region25: #{forward.1} parent=11 // pred_check
        %p171 = pneg %p121
      $region26: #{forward.1} parent=11 // pred_check_branch
        %173 = sbr.rel (%p171) target = $region28
      $region27: #{forward.1} parent=11 // pred_region
        _
      $region28: #{forward.1} parent=11 // pred_fallthru
        _
    $region12: #{forward.1} parent=5 // pred_fallthru
      _
    %p174 = scmp.lt.s32.totalorder %s11, 2
    // Predicated region
    $region29: #{forward.1} parent=5 // pred_check
      %p175 = pneg %p174
    $region30: #{forward.1} parent=5 // pred_check_branch
      %177 = sbr.rel (%p175) target = $region32
    $region31: #{forward.1} parent=5 // pred_region
      // Predicated region
      $region33: #{forward.1} parent=31 // pred_check
        %p178 = pneg %p31
      $region34: #{forward.1} parent=31 // pred_check_branch
        %180 = sbr.rel (%p178) target = $region36
      $region35: #{forward.1} parent=31 // pred_region
        %s181 = smul.u32 16, %s11
        %p182 = scmp.lt.s32.totalorder %s181, 31
        %s183 = scalar_select %p182, %s181, 31
        %s184 = smul.addr %s183, 3
        %s185 = smul.addr %s184, 4
        %s186 = scalar_lea.vmem %s0, %s185
        %s187 = smul.u32 16, %s11
      $region36: #{forward.1} parent=31 // pred_fallthru
        _
    $region32: #{forward.1} parent=5 // pred_fallthru
      _
    %p188 = scmp.le.s32.totalorder 1, %s11
    %p189 = scmp.lt.s32.totalorder %s11, 3
    %p190 = pnand %p188, %p189
    %p191 = pneg %p190
    // Predicated region
    $region37: #{forward.1} parent=5 // pred_check
      _
    $region38: #{forward.1} parent=5 // pred_check_branch
      %193 = sbr.rel (%p190) target = $region40
    $region39: #{forward.1} parent=5 // pred_region
      %s194 = ssub.s32 %s11, 1
      %s195 = smul.u32 16, %s16
      %p196 = scmp.lt.s32.totalorder %s195, 31
      %s197 = scalar_select %p196, %s195, 31
      %s198 = smul.addr %s197, 3
      %s199 = smul.addr %s198, 4
      %s200 = scalar_lea.vmem %s0, %s199
      %p201 = pneg %p37
      %p202 = pneg %p34
      %p203 = pneg %p58
      %p204 = pneg %p55
      %p205 = pneg %p79
      %p206 = pneg %p76
      %p207 = pneg %p100
      %p208 = pneg %p97
      %p209 = pneg %p121
      %p210 = pneg %p118
      %p211 = pneg %p147
      %p212 = pneg %p144
      %p213 = scmp.lt.s32.totalorder %s16, 1
      %s214 = scalar_select %p213, %s16, 1
      %s215 = smul.addr %s214, 8
      %s216 = scalar_lea.vmem %s5, %s215
      %s217 = smul.u32 16, %s16
      %p218 = scmp.lt.s32.totalorder %s217, 31
      %s219 = scalar_select %p218, %s217, 31
      %s220 = smul.addr %s219, 3
      %s221 = smul.addr %s220, 4
      %s222 = scalar_lea.vmem %s0, %s221
      %s223 = smul.u32 16, %s16
      %p224 = scmp.lt.s32.totalorder %s16, 1
      %s225 = scalar_select %p224, %s16, 1
      %s226 = smul.addr %s225, 8
      %s227 = scalar_lea.vmem %s5, %s226
      %v229 = vld [vmem:[%s222] sm:$0xff]
      %v230 = vld [vmem:[%s222 + $0x8] sm:$0xf]
      %v231 = vld [vmem:[%s222 + $0xc] sm:$0xff]
      %v232 = vld [vmem:[%s222 + $0x14] sm:$0xf]
      %v233 = vld [vmem:[%s222 + $0x18] sm:$0xff]
      %v234 = vld [vmem:[%s222 + $0x20] sm:$0xf]
      %v235 = vld [vmem:[%s222 + $0x24] sm:$0xff]
      %v236 = vld [vmem:[%s222 + $0x2c] sm:$0xf]
      %v237 = vld [vmem:[%s222 + $0x30] sm:$0xff]
      %v238 = vld [vmem:[%s222 + $0x38] sm:$0xf]
      %v239 = vld [vmem:[%s222 + $0x3c] sm:$0xff]
      %v240 = vld [vmem:[%s222 + $0x44] sm:$0xf]
      %v241 = vld [vmem:[%s222 + $0x48] sm:$0xff]
      %v242 = vld [vmem:[%s222 + $0x50] sm:$0xf]
      %v243 = vld [vmem:[%s222 + $0x54] sm:$0xff]
      %v244 = vld [vmem:[%s222 + $0x5c] sm:$0xf]
      %v245 = vld [vmem:[%s222 + $0x60] sm:$0xff]
      %v246 = vld [vmem:[%s222 + $0x68] sm:$0xf]
      %v247 = vld [vmem:[%s222 + $0x6c] sm:$0xff]
      %v248 = vld [vmem:[%s222 + $0x74] sm:$0xf]
      %v249 = vld [vmem:[%s222 + $0x78] sm:$0xff]
      %v250 = vld [vmem:[%s222 + $0x80] sm:$0xf]
      %v251 = vld [vmem:[%s222 + $0x84] sm:$0xff]
      %v252 = vld [vmem:[%s222 + $0x8c] sm:$0xf]
      %v253 = vld [vmem:[%s222 + $0x90] sm:$0xff]
      %v254 = vld [vmem:[%s222 + $0x98] sm:$0xf]
      %v255 = vld [vmem:[%s222 + $0x9c] sm:$0xff]
      %v256 = vld [vmem:[%s222 + $0xa4] sm:$0xf]
      %v257 = vld [vmem:[%s222 + $0xa8] sm:$0xff]
      %v258 = vld [vmem:[%s222 + $0xb0] sm:$0xf]
      %v259 = vld [vmem:[%s222 + $0xb4] sm:$0xff]
      %v260 = vld [vmem:[%s222 + $0xbc] sm:$0xf]
      %v261 = vld [vmem:[%s1] sm:$0xf]
      %v262 = vld [vmem:[%s1 + $0x4] sm:$0xf]
      %v263 = vld [vmem:[%s1 + $0x8] sm:$0xf]
      %v264 = vld [vmem:[%s1 + $0xc] sm:$0xf]
      %v265 = vld [vmem:[%s1 + $0x10] sm:$0xf]
      %v266 = vld [vmem:[%s1 + $0x14] sm:$0xf]
      %v267 = vld [vmem:[%s1 + $0x18] sm:$0xf]
      %v268 = vld [vmem:[%s1 + $0x1c] sm:$0xf]
      %v269 = vld [vmem:[%s1 + $0x20] sm:$0xf]
      %v270 = vld [vmem:[%s1 + $0x24] sm:$0xf]
      %v271 = vld [vmem:[%s1 + $0x28] sm:$0xf]
      %v272 = vld [vmem:[%s1 + $0x2c] sm:$0xf]
      %v273 = vld [vmem:[%s1 + $0x30] sm:$0xf]
      %v274 = vld [vmem:[%s1 + $0x34] sm:$0xf]
      %v275 = vld [vmem:[%s1 + $0x38] sm:$0xf]
      %v276 = vld [vmem:[%s1 + $0x3c] sm:$0xf]
      %v277 = vld [vmem:[%s1 + $0x40] sm:$0xf]
      %v278 = vld [vmem:[%s1 + $0x44] sm:$0xf]
      %v279 = vld [vmem:[%s1 + $0x48] sm:$0xf]
      %v280 = vld [vmem:[%s1 + $0x4c] sm:$0xf]
      %v281 = vld [vmem:[%s1 + $0x50] sm:$0xf]
      %v282 = vld [vmem:[%s1 + $0x54] sm:$0xf]
      %v283 = vld [vmem:[%s1 + $0x58] sm:$0xf]
      %v284 = vld [vmem:[%s1 + $0x5c] sm:$0xf]
      %v285 = vld [vmem:[%s1 + $0x60] sm:$0xf]
      %v286 = vld [vmem:[%s1 + $0x64] sm:$0xf]
      %v287 = vld [vmem:[%s1 + $0x68] sm:$0xf]
      %v288 = vld [vmem:[%s1 + $0x6c] sm:$0xf]
      %v289 = vld [vmem:[%s1 + $0x70] sm:$0xf]
      %v290 = vld [vmem:[%s1 + $0x74] sm:$0xf]
      %v291 = vld [vmem:[%s1 + $0x78] sm:$0xf]
      %v292 = vld [vmem:[%s1 + $0x7c] sm:$0xf]
      %v293 = vld [vmem:[%s1 + $0x80] sm:$0xf]
      %v294 = vld [vmem:[%s1 + $0x84] sm:$0xf]
      %v295 = vld [vmem:[%s1 + $0x88] sm:$0xf]
      %v296 = vld [vmem:[%s1 + $0x8c] sm:$0xf]
      %v297 = vld [vmem:[%s1 + $0x90] sm:$0xf]
      %v298 = vld [vmem:[%s1 + $0x94] sm:$0xf]
      %v299 = vld [vmem:[%s1 + $0x98] sm:$0xf]
      %v300 = vld [vmem:[%s1 + $0x9c] sm:$0xf]
      %v301 = vld [vmem:[%s1 + $0xa0] sm:$0xf]
      %v302 = vld [vmem:[%s1 + $0xa4] sm:$0xf]
      %v303 = vld [vmem:[%s1 + $0xa8] sm:$0xf]
      %v304 = vld [vmem:[%s1 + $0xac] sm:$0xf]
      %v305 = vld [vmem:[%s1 + $0xb0] sm:$0xf]
      %v306 = vld [vmem:[%s1 + $0xb4] sm:$0xf]
      %v307 = vld [vmem:[%s1 + $0xb8] sm:$0xf]
      %v308 = vld [vmem:[%s1 + $0xbc] sm:$0xf]
      %v309 = vld [vmem:[%s2] sm:$0x1]
      %v311 = vlaneseq
      %v312 = vshrl.u32 %v311, 7
      %v313 = vsub.s32 0, %v312
      %v314 = vrot.slane %v309, %v313
      %v348 = vunpack.c.l.b16 %v229
      %v349 = vunpack.c.h.b16 %v229
      %v350 = vunpack.c.l.b16 %v230
      %v351 = vunpack.c.l.b16 %v231
      %v352 = vunpack.c.h.b16 %v231
      %v353 = vunpack.c.l.b16 %v232
      %v354 = vunpack.c.l.b16 %v233
      %v355 = vunpack.c.h.b16 %v233
      %v356 = vunpack.c.l.b16 %v234
      %v357 = vunpack.c.l.b16 %v235
      %v358 = vunpack.c.h.b16 %v235
      %v359 = vunpack.c.l.b16 %v236
      %v360 = vunpack.c.l.b16 %v237
      %v361 = vunpack.c.h.b16 %v237
      %v362 = vunpack.c.l.b16 %v238
      %v363 = vunpack.c.l.b16 %v239
      %v364 = vunpack.c.h.b16 %v239
      %v365 = vunpack.c.l.b16 %v240
      %v366 = vunpack.c.l.b16 %v241
      %v367 = vunpack.c.h.b16 %v241
      %v368 = vunpack.c.l.b16 %v242
      %v369 = vunpack.c.l.b16 %v243
      %v370 = vunpack.c.h.b16 %v243
      %v371 = vunpack.c.l.b16 %v244
      %v372 = vunpack.c.l.b16 %v245
      %v373 = vunpack.c.h.b16 %v245
      %v374 = vunpack.c.l.b16 %v246
      %v375 = vunpack.c.l.b16 %v247
      %v376 = vunpack.c.h.b16 %v247
      %v377 = vunpack.c.l.b16 %v248
      %v378 = vunpack.c.l.b16 %v249
      %v379 = vunpack.c.h.b16 %v249
      %v380 = vunpack.c.l.b16 %v250
      %v381 = vunpack.c.l.b16 %v251
      %v382 = vunpack.c.h.b16 %v251
      %v383 = vunpack.c.l.b16 %v252
      %v384 = vunpack.c.l.b16 %v253
      %v385 = vunpack.c.h.b16 %v253
      %v386 = vunpack.c.l.b16 %v254
      %v387 = vunpack.c.l.b16 %v255
      %v388 = vunpack.c.h.b16 %v255
      %v389 = vunpack.c.l.b16 %v256
      %v390 = vunpack.c.l.b16 %v257
      %v391 = vunpack.c.h.b16 %v257
      %v392 = vunpack.c.l.b16 %v258
      %v393 = vunpack.c.l.b16 %v259
      %v394 = vunpack.c.h.b16 %v259
      %v395 = vunpack.c.l.b16 %v260
      %v396 = vpack.c.b16 %v351, %v348
      %v397 = vpack.c.b16 %v352, %v349
      %v398 = vpack.c.b16 %v353, %v350
      %v399 = vpack.c.b16 %v357, %v354
      %v400 = vpack.c.b16 %v358, %v355
      %v401 = vpack.c.b16 %v359, %v356
      %v402 = vpack.c.b16 %v363, %v360
      %v403 = vpack.c.b16 %v364, %v361
      %v404 = vpack.c.b16 %v365, %v362
      %v405 = vpack.c.b16 %v369, %v366
      %v406 = vpack.c.b16 %v370, %v367
      %v407 = vpack.c.b16 %v371, %v368
      %v408 = vpack.c.b16 %v375, %v372
      %v409 = vpack.c.b16 %v376, %v373
      %v410 = vpack.c.b16 %v377, %v374
      %v411 = vpack.c.b16 %v381, %v378
      %v412 = vpack.c.b16 %v382, %v379
      %v413 = vpack.c.b16 %v383, %v380
      %v414 = vpack.c.b16 %v387, %v384
      %v415 = vpack.c.b16 %v388, %v385
      %v416 = vpack.c.b16 %v389, %v386
      %v417 = vpack.c.b16 %v393, %v390
      %v418 = vpack.c.b16 %v394, %v391
      %v419 = vpack.c.b16 %v395, %v392
      %v492 = vunpack.c.l.b16 %v261
      %v493 = vunpack.c.l.b16 %v262
      %v494 = vunpack.c.l.b16 %v263
      %v495 = vunpack.c.l.b16 %v264
      %v496 = vunpack.c.l.b16 %v265
      %v497 = vunpack.c.l.b16 %v266
      %v498 = vunpack.c.l.b16 %v267
      %v499 = vunpack.c.l.b16 %v268
      %v500 = vunpack.c.l.b16 %v269
      %v501 = vunpack.c.l.b16 %v270
      %v502 = vunpack.c.l.b16 %v271
      %v503 = vunpack.c.l.b16 %v272
      %v504 = vunpack.c.l.b16 %v273
      %v505 = vunpack.c.l.b16 %v274
      %v506 = vunpack.c.l.b16 %v275
      %v507 = vunpack.c.l.b16 %v276
      %v508 = vunpack.c.l.b16 %v277
      %v509 = vunpack.c.l.b16 %v278
      %v510 = vunpack.c.l.b16 %v279
      %v511 = vunpack.c.l.b16 %v280
      %v512 = vunpack.c.l.b16 %v281
      %v513 = vunpack.c.l.b16 %v282
      %v514 = vunpack.c.l.b16 %v283
      %v515 = vunpack.c.l.b16 %v284
      %v516 = vunpack.c.l.b16 %v285
      %v517 = vunpack.c.l.b16 %v286
      %v518 = vunpack.c.l.b16 %v287
      %v519 = vunpack.c.l.b16 %v288
      %v520 = vunpack.c.l.b16 %v289
      %v521 = vunpack.c.l.b16 %v290
      %v522 = vunpack.c.l.b16 %v291
      %v523 = vunpack.c.l.b16 %v292
      %v524 = vunpack.c.l.b16 %v293
      %v525 = vunpack.c.l.b16 %v294
      %v526 = vunpack.c.l.b16 %v295
      %v527 = vunpack.c.l.b16 %v296
      %v528 = vunpack.c.l.b16 %v297
      %v529 = vunpack.c.l.b16 %v298
      %v530 = vunpack.c.l.b16 %v299
      %v531 = vunpack.c.l.b16 %v300
      %v532 = vunpack.c.l.b16 %v301
      %v533 = vunpack.c.l.b16 %v302
      %v534 = vunpack.c.l.b16 %v303
      %v535 = vunpack.c.l.b16 %v304
      %v536 = vunpack.c.l.b16 %v305
      %v537 = vunpack.c.l.b16 %v306
      %v538 = vunpack.c.l.b16 %v307
      %v539 = vunpack.c.l.b16 %v308
      %v540 = vpack.c.b16 %v493, %v492
      %v541 = vpack.c.b16 %v495, %v494
      %v542 = vpack.c.b16 %v497, %v496
      %v543 = vpack.c.b16 %v499, %v498
      %v544 = vpack.c.b16 %v501, %v500
      %v545 = vpack.c.b16 %v503, %v502
      %v546 = vpack.c.b16 %v505, %v504
      %v547 = vpack.c.b16 %v507, %v506
      %v548 = vpack.c.b16 %v509, %v508
      %v549 = vpack.c.b16 %v511, %v510
      %v550 = vpack.c.b16 %v513, %v512
      %v551 = vpack.c.b16 %v515, %v514
      %v552 = vpack.c.b16 %v517, %v516
      %v553 = vpack.c.b16 %v519, %v518
      %v554 = vpack.c.b16 %v521, %v520
      %v555 = vpack.c.b16 %v523, %v522
      %v556 = vpack.c.b16 %v525, %v524
      %v557 = vpack.c.b16 %v527, %v526
      %v558 = vpack.c.b16 %v529, %v528
      %v559 = vpack.c.b16 %v531, %v530
      %v560 = vpack.c.b16 %v533, %v532
      %v561 = vpack.c.b16 %v535, %v534
      %v562 = vpack.c.b16 %v537, %v536
      %v563 = vpack.c.b16 %v539, %v538
      %588 = vmatprep.subr.bf16.mxu0 0
      %589 = vmatpush1.bf16.msra.mxu0 %v540
      %590 = vmatprep.subr.bf16.mxu0 0
      %591 = vmatpush1.bf16.msra.mxu0 %v541
      %592 = vmatprep.subr.bf16.mxu0 0
      %593 = vmatpush1.bf16.msra.mxu0 %v542
      %594 = vmatprep.subr.bf16.mxu0 0
      %595 = vmatpush1.bf16.msra.mxu0 %v543
      %596 = vmatprep.subr.bf16.mxu0 0
      %597 = vmatpush1.bf16.msra.mxu0 %v544
      %598 = vmatprep.subr.bf16.mxu0 0
      %599 = vmatpush1.bf16.msra.mxu0 %v545
      %600 = vmatprep.subr.bf16.mxu0 0
      %601 = vmatpush1.bf16.msra.mxu0 %v546
      %602 = vmatprep.subr.bf16.mxu0 0
      %603 = vmatpush1.bf16.msra.mxu0 %v547
      %604 = vmatprep.subr.bf16.mxu0 0
      %605 = vmatpush1.bf16.msra.mxu0 %v548
      %606 = vmatprep.subr.bf16.mxu0 0
      %607 = vmatpush1.bf16.msra.mxu0 %v549
      %608 = vmatprep.subr.bf16.mxu0 0
      %609 = vmatpush1.bf16.msra.mxu0 %v550
      %610 = vmatprep.subr.bf16.mxu0 0
      %611 = vmatpush1.bf16.msra.mxu0 %v551
      %612 = vmatprep.subr.bf16.mxu0 0
      %613 = vmatpush1.bf16.msra.mxu0 %v552
      %614 = vmatprep.subr.bf16.mxu0 0
      %615 = vmatpush1.bf16.msra.mxu0 %v553
      %616 = vmatprep.subr.bf16.mxu0 0
      %617 = vmatpush1.bf16.msra.mxu0 %v554
      %618 = vmatprep.subr.bf16.mxu0 0
      %619 = vmatpush1.bf16.msra.mxu0 %v555
      %620 = vmatprep.mubr.bf16.mxu0 %v397
      %621 = vmatmul.mubr.bf16.gmra.mrb[0].mxu0 %v396
      %v622 = vpop.f32.mrb[0].mxu0
      %v623 = vadd.f32 %v314, %v622
      %v624 = vpop.f32.mrb[0].mxu0
      %v625 = vpop.f32.mrb[0].mxu0
      %v626 = vadd.f32 %v314, %v625
      %v627 = vpop.f32.mrb[0].mxu0
      %628 = vmatprep.mubr.bf16.mxu0 %v400
      %629 = vmatmul.mubr.bf16.gmra.mrb[0].mxu0 %v399
      %v630 = vpop.f32.mrb[0].mxu0
      %v631 = vadd.f32 %v314, %v630
      %v632 = vpop.f32.mrb[0].mxu0
      %v633 = vpop.f32.mrb[0].mxu0
      %v634 = vadd.f32 %v314, %v633
      %v635 = vpop.f32.mrb[0].mxu0
      %636 = vmatprep.mubr.bf16.mxu0 %v403
      %637 = vmatmul.mubr.bf16.gmra.mrb[0].mxu0 %v402
      %v638 = vpop.f32.mrb[0].mxu0
      %v639 = vadd.f32 %v314, %v638
      %v640 = vpop.f32.mrb[0].mxu0
      %v641 = vpop.f32.mrb[0].mxu0
      %v642 = vadd.f32 %v314, %v641
      %v643 = vpop.f32.mrb[0].mxu0
      %644 = vmatprep.mubr.bf16.mxu0 %v406
      %645 = vmatmul.mubr.bf16.gmra.mrb[0].mxu0 %v405
      %v646 = vpop.f32.mrb[0].mxu0
      %v647 = vadd.f32 %v314, %v646
      %v648 = vpop.f32.mrb[0].mxu0
      %v649 = vpop.f32.mrb[0].mxu0
      %v650 = vadd.f32 %v314, %v649
      %v651 = vpop.f32.mrb[0].mxu0
      %652 = vmatprep.mubr.bf16.mxu0 %v409
      %653 = vmatmul.mubr.bf16.gmra.mrb[0].mxu0 %v408
      %v654 = vpop.f32.mrb[0].mxu0
      %v655 = vadd.f32 %v314, %v654
      %v656 = vpop.f32.mrb[0].mxu0
      %v657 = vpop.f32.mrb[0].mxu0
      %v658 = vadd.f32 %v314, %v657
      %v659 = vpop.f32.mrb[0].mxu0
      %660 = vmatprep.mubr.bf16.mxu0 %v412
      %661 = vmatmul.mubr.bf16.gmra.mrb[0].mxu0 %v411
      %v662 = vpop.f32.mrb[0].mxu0
      %v663 = vadd.f32 %v314, %v662
      %v664 = vpop.f32.mrb[0].mxu0
      %v665 = vpop.f32.mrb[0].mxu0
      %v666 = vadd.f32 %v314, %v665
      %v667 = vpop.f32.mrb[0].mxu0
      %668 = vmatprep.mubr.bf16.mxu0 %v415
      %669 = vmatmul.mubr.bf16.gmra.mrb[0].mxu0 %v414
      %v670 = vpop.f32.mrb[0].mxu0
      %v671 = vadd.f32 %v314, %v670
      %v672 = vpop.f32.mrb[0].mxu0
      %v673 = vpop.f32.mrb[0].mxu0
      %v674 = vadd.f32 %v314, %v673
      %v675 = vpop.f32.mrb[0].mxu0
      %676 = vmatprep.mubr.bf16.mxu0 %v418
      %677 = vmatmul.mubr.bf16.gmra.mrb[0].mxu0 %v417
      %v678 = vpop.f32.mrb[0].mxu0
      %v679 = vadd.f32 %v314, %v678
      %v680 = vpop.f32.mrb[0].mxu0
      %v681 = vpop.f32.mrb[0].mxu0
      %v682 = vadd.f32 %v314, %v681
      %v683 = vpop.f32.mrb[0].mxu0
      %684 = vdwg.mxu0
      %685 = vmatprep.subr.bf16.mxu0 0
      %686 = vmatpush1.bf16.msra.mxu0 %v556
      %687 = vmatprep.subr.bf16.mxu0 0
      %688 = vmatpush1.bf16.msra.mxu0 %v557
      %689 = vmatprep.subr.bf16.mxu0 0
      %690 = vmatpush1.bf16.msra.mxu0 %v558
      %691 = vmatprep.subr.bf16.mxu0 0
      %692 = vmatpush1.bf16.msra.mxu0 %v559
      %693 = vmatprep.subr.bf16.mxu0 0
      %694 = vmatpush1.bf16.msra.mxu0 %v560
      %695 = vmatprep.subr.bf16.mxu0 0
      %696 = vmatpush1.bf16.msra.mxu0 %v561
      %697 = vmatprep.subr.bf16.mxu0 0
      %698 = vmatpush1.bf16.msra.mxu0 %v562
      %699 = vmatprep.subr.bf16.mxu0 0
      %700 = vmatpush1.bf16.msra.mxu0 %v563
      %701 = vmatprep.subr.bf16.mxu0 0
      %702 = vmatpush1.bf16.msra.mxu0 0
      %703 = vmatprep.subr.bf16.mxu0 0
      %704 = vmatpush1.bf16.msra.mxu0 0
      %705 = vmatprep.subr.bf16.mxu0 0
      %706 = vmatpush1.bf16.msra.mxu0 0
      %707 = vmatprep.subr.bf16.mxu0 0
      %708 = vmatpush1.bf16.msra.mxu0 0
      %709 = vmatprep.subr.bf16.mxu0 0
      %710 = vmatpush1.bf16.msra.mxu0 0
      %711 = vmatprep.subr.bf16.mxu0 0
      %712 = vmatpush1.bf16.msra.mxu0 0
      %713 = vmatprep.subr.bf16.mxu0 0
      %714 = vmatpush1.bf16.msra.mxu0 0
      %715 = vmatprep.subr.bf16.mxu0 0
      %716 = vmatpush1.bf16.msra.mxu0 0
      %717 = vmatprep.mubr.bf16.mxu0 0
      %718 = vmatmul.mubr.bf16.gmra.mrb[0].mxu0 %v398
      %v719 = vpop.f32.mrb[0].mxu0
      %v720 = vadd.f32 %v623, %v719
      %v721 = vpop.f32.mrb[0].mxu0
      %v722 = vpop.f32.mrb[0].mxu0
      %v723 = vadd.f32 %v626, %v722
      %v724 = vpop.f32.mrb[0].mxu0
      %725 = vmatprep.mubr.bf16.mxu0 0
      %726 = vmatmul.mubr.bf16.gmra.mrb[0].mxu0 %v401
      %v727 = vpop.f32.mrb[0].mxu0
      %v728 = vadd.f32 %v631, %v727
      %v729 = vpop.f32.mrb[0].mxu0
      %v730 = vpop.f32.mrb[0].mxu0
      %v731 = vadd.f32 %v634, %v730
      %v732 = vpop.f32.mrb[0].mxu0
      %733 = vmatprep.mubr.bf16.mxu0 0
      %734 = vmatmul.mubr.bf16.gmra.mrb[0].mxu0 %v404
      %v735 = vpop.f32.mrb[0].mxu0
      %v736 = vadd.f32 %v639, %v735
      %v737 = vpop.f32.mrb[0].mxu0
      %v738 = vpop.f32.mrb[0].mxu0
      %v739 = vadd.f32 %v642, %v738
      %v740 = vpop.f32.mrb[0].mxu0
      %741 = vmatprep.mubr.bf16.mxu0 0
      %742 = vmatmul.mubr.bf16.gmra.mrb[0].mxu0 %v407
      %v743 = vpop.f32.mrb[0].mxu0
      %v744 = vadd.f32 %v647, %v743
      %v745 = vpop.f32.mrb[0].mxu0
      %v746 = vpop.f32.mrb[0].mxu0
      %v747 = vadd.f32 %v650, %v746
      %v748 = vpop.f32.mrb[0].mxu0
      %749 = vmatprep.mubr.bf16.mxu0 0
      %750 = vmatmul.mubr.bf16.gmra.mrb[0].mxu0 %v410
      %v751 = vpop.f32.mrb[0].mxu0
      %v752 = vadd.f32 %v655, %v751
      %v753 = vpop.f32.mrb[0].mxu0
      %v754 = vpop.f32.mrb[0].mxu0
      %v755 = vadd.f32 %v658, %v754
      %v756 = vpop.f32.mrb[0].mxu0
      %757 = vmatprep.mubr.bf16.mxu0 0
      %758 = vmatmul.mubr.bf16.gmra.mrb[0].mxu0 %v413
      %v759 = vpop.f32.mrb[0].mxu0
      %v760 = vadd.f32 %v663, %v759
      %v761 = vpop.f32.mrb[0].mxu0
      %v762 = vpop.f32.mrb[0].mxu0
      %v763 = vadd.f32 %v666, %v762
      %v764 = vpop.f32.mrb[0].mxu0
      %765 = vmatprep.mubr.bf16.mxu0 0
      %766 = vmatmul.mubr.bf16.gmra.mrb[0].mxu0 %v416
      %v767 = vpop.f32.mrb[0].mxu0
      %v768 = vadd.f32 %v671, %v767
      %v769 = vpop.f32.mrb[0].mxu0
      %v770 = vpop.f32.mrb[0].mxu0
      %v771 = vadd.f32 %v674, %v770
      %v772 = vpop.f32.mrb[0].mxu0
      %773 = vmatprep.mubr.bf16.mxu0 0
      %774 = vmatmul.mubr.bf16.gmra.mrb[0].mxu0 %v419
      %v775 = vpop.f32.mrb[0].mxu0
      %v776 = vadd.f32 %v679, %v775
      %v777 = vpop.f32.mrb[0].mxu0
      %v778 = vpop.f32.mrb[0].mxu0
      %v779 = vadd.f32 %v682, %v778
      %v780 = vpop.f32.mrb[0].mxu0
      %781 = vdwg.mxu0
      %v782 = vmax.f32 %v720, 0.0
      %v783 = vmax.f32 %v723, 0.0
      %v784 = vmax.f32 %v728, 0.0
      %v785 = vmax.f32 %v731, 0.0
      %v786 = vmax.f32 %v736, 0.0
      %v787 = vmax.f32 %v739, 0.0
      %v788 = vmax.f32 %v744, 0.0
      %v789 = vmax.f32 %v747, 0.0
      %v790 = vmax.f32 %v752, 0.0
      %v791 = vmax.f32 %v755, 0.0
      %v792 = vmax.f32 %v760, 0.0
      %v793 = vmax.f32 %v763, 0.0
      %v794 = vmax.f32 %v768, 0.0
      %v795 = vmax.f32 %v771, 0.0
      %v796 = vmax.f32 %v776, 0.0
      %v797 = vmax.f32 %v779, 0.0
      %v798 = vrot.slane %v782, 1
      %v799 = vrot.slane %v783, 1
      %v800 = vrot.slane %v784, 1
      %v801 = vrot.slane %v785, 1
      %v802 = vrot.slane %v786, 1
      %v803 = vrot.slane %v787, 1
      %v804 = vrot.slane %v788, 1
      %v805 = vrot.slane %v789, 1
      %v806 = vrot.slane %v790, 1
      %v807 = vrot.slane %v791, 1
      %v808 = vrot.slane %v792, 1
      %v809 = vrot.slane %v793, 1
      %v810 = vrot.slane %v794, 1
      %v811 = vrot.slane %v795, 1
      %v812 = vrot.slane %v796, 1
      %v813 = vrot.slane %v797, 1
      %v814 = vlaneseq
      %v815 = vshrl.u32 %v814, 7
      %vm816 = vcmp.lt.s32.totalorder %v815, 7
      %v817 = vsel %vm816, %v812, %v813
      %v818 = vsel %vm816, %v811, %v812
      %v819 = vsel %vm816, %v810, %v811
      %v820 = vsel %vm816, %v809, %v810
      %v821 = vsel %vm816, %v808, %v809
      %v822 = vsel %vm816, %v807, %v808
      %v823 = vsel %vm816, %v806, %v807
      %v824 = vsel %vm816, %v805, %v806
      %v825 = vsel %vm816, %v804, %v805
      %v826 = vsel %vm816, %v803, %v804
      %v827 = vsel %vm816, %v802, %v803
      %v828 = vsel %vm816, %v801, %v802
      %v829 = vsel %vm816, %v800, %v801
      %v830 = vsel %vm816, %v799, %v800
      %v831 = vsel %vm816, %v798, %v799
      %v832 = vsel %vm816, %v813, %v798
      %v833 = vmax.f32 %v782, %v831
      %v834 = vmax.f32 %v783, %v830
      %v835 = vmax.f32 %v784, %v829
      %v836 = vmax.f32 %v785, %v828
      %v837 = vmax.f32 %v786, %v827
      %v838 = vmax.f32 %v787, %v826
      %v839 = vmax.f32 %v788, %v825
      %v840 = vmax.f32 %v789, %v824
      %v841 = vmax.f32 %v790, %v823
      %v842 = vmax.f32 %v791, %v822
      %v843 = vmax.f32 %v792, %v821
      %v844 = vmax.f32 %v793, %v820
      %v845 = vmax.f32 %v794, %v819
      %v846 = vmax.f32 %v795, %v818
      %v847 = vmax.f32 %v796, %v817
      %v848 = vmax.f32 %v797, %v832
      %849 = vrot.lane.b32.xlu0 %v833, 120
      %v850 = vpop.permute.xlu0 %849
      %851 = vrot.lane.b32.xlu0 %v834, 120
      %v852 = vpop.permute.xlu0 %851
      %853 = vrot.lane.b32.xlu0 %v835, 120
      %v854 = vpop.permute.xlu0 %853
      %855 = vrot.lane.b32.xlu0 %v836, 120
      %v856 = vpop.permute.xlu0 %855
      %857 = vrot.lane.b32.xlu0 %v837, 120
      %v858 = vpop.permute.xlu0 %857
      %859 = vrot.lane.b32.xlu0 %v838, 120
      %v860 = vpop.permute.xlu0 %859
      %861 = vrot.lane.b32.xlu0 %v839, 120
      %v862 = vpop.permute.xlu0 %861
      %863 = vrot.lane.b32.xlu0 %v840, 120
      %v864 = vpop.permute.xlu0 %863
      %865 = vrot.lane.b32.xlu0 %v841, 120
      %v866 = vpop.permute.xlu0 %865
      %867 = vrot.lane.b32.xlu0 %v842, 120
      %v868 = vpop.permute.xlu0 %867
      %869 = vrot.lane.b32.xlu0 %v843, 120
      %v870 = vpop.permute.xlu0 %869
      %871 = vrot.lane.b32.xlu0 %v844, 120
      %v872 = vpop.permute.xlu0 %871
      %873 = vrot.lane.b32.xlu0 %v845, 120
      %v874 = vpop.permute.xlu0 %873
      %875 = vrot.lane.b32.xlu0 %v846, 120
      %v876 = vpop.permute.xlu0 %875
      %877 = vrot.lane.b32.xlu0 %v847, 120
      %v878 = vpop.permute.xlu0 %877
      %879 = vrot.lane.b32.xlu0 %v848, 120
      %v880 = vpop.permute.xlu0 %879
      %v881 = vmax.f32 %v833, %v850
      %v882 = vmax.f32 %v834, %v852
      %v883 = vmax.f32 %v835, %v854
      %v884 = vmax.f32 %v836, %v856
      %v885 = vmax.f32 %v837, %v858
      %v886 = vmax.f32 %v838, %v860
      %v887 = vmax.f32 %v839, %v862
      %v888 = vmax.f32 %v840, %v864
      %v889 = vmax.f32 %v841, %v866
      %v890 = vmax.f32 %v842, %v868
      %v891 = vmax.f32 %v843, %v870
      %v892 = vmax.f32 %v844, %v872
      %v893 = vmax.f32 %v845, %v874
      %v894 = vmax.f32 %v846, %v876
      %v895 = vmax.f32 %v847, %v878
      %v896 = vmax.f32 %v848, %v880
      %v897 = vld [vmem:[%s3] sm:$0xff]
      %v898 = vld [vmem:[%s3 + $0x8] sm:$0xff]
      %v899 = vmul.f32 %v881, %v897
      %v900 = vmul.f32 %v882, %v898
      %v901 = vmul.f32 %v883, %v897
      %v902 = vmul.f32 %v884, %v898
      %v903 = vmul.f32 %v885, %v897
      %v904 = vmul.f32 %v886, %v898
      %v905 = vmul.f32 %v887, %v897
      %v906 = vmul.f32 %v888, %v898
      %v907 = vmul.f32 %v889, %v897
      %v908 = vmul.f32 %v890, %v898
      %v909 = vmul.f32 %v891, %v897
      %v910 = vmul.f32 %v892, %v898
      %v911 = vmul.f32 %v893, %v897
      %v912 = vmul.f32 %v894, %v898
      %v913 = vmul.f32 %v895, %v897
      %v914 = vmul.f32 %v896, %v898
      %v915 = vadd.f32 %v899, %v900
      %v916 = vrot.slane %v915, 4
      %v917 = vadd.f32 %v915, %v916
      %v918 = vrot.slane %v917, 2
      %v919 = vadd.f32 %v917, %v918
      %v920 = vrot.slane %v919, 1
      %v921 = vadd.f32 %v919, %v920
      %v922 = vadd.f32 %v901, %v902
      %v923 = vrot.slane %v922, 4
      %v924 = vadd.f32 %v922, %v923
      %v925 = vrot.slane %v924, 2
      %v926 = vadd.f32 %v924, %v925
      %v927 = vrot.slane %v926, 1
      %v928 = vadd.f32 %v926, %v927
      %v929 = vadd.f32 %v903, %v904
      %v930 = vrot.slane %v929, 4
      %v931 = vadd.f32 %v929, %v930
      %v932 = vrot.slane %v931, 2
      %v933 = vadd.f32 %v931, %v932
      %v934 = vrot.slane %v933, 1
      %v935 = vadd.f32 %v933, %v934
      %v936 = vadd.f32 %v905, %v906
      %v937 = vrot.slane %v936, 4
      %v938 = vadd.f32 %v936, %v937
      %v939 = vrot.slane %v938, 2
      %v940 = vadd.f32 %v938, %v939
      %v941 = vrot.slane %v940, 1
      %v942 = vadd.f32 %v940, %v941
      %v943 = vadd.f32 %v907, %v908
      %v944 = vrot.slane %v943, 4
      %v945 = vadd.f32 %v943, %v944
      %v946 = vrot.slane %v945, 2
      %v947 = vadd.f32 %v945, %v946
      %v948 = vrot.slane %v947, 1
      %v949 = vadd.f32 %v947, %v948
      %v950 = vadd.f32 %v909, %v910
      %v951 = vrot.slane %v950, 4
      %v952 = vadd.f32 %v950, %v951
      %v953 = vrot.slane %v952, 2
      %v954 = vadd.f32 %v952, %v953
      %v955 = vrot.slane %v954, 1
      %v956 = vadd.f32 %v954, %v955
      %v957 = vadd.f32 %v911, %v912
      %v958 = vrot.slane %v957, 4
      %v959 = vadd.f32 %v957, %v958
      %v960 = vrot.slane %v959, 2
      %v961 = vadd.f32 %v959, %v960
      %v962 = vrot.slane %v961, 1
      %v963 = vadd.f32 %v961, %v962
      %v964 = vadd.f32 %v913, %v914
      %v965 = vrot.slane %v964, 4
      %v966 = vadd.f32 %v964, %v965
      %v967 = vrot.slane %v966, 2
      %v968 = vadd.f32 %v966, %v967
      %v969 = vrot.slane %v968, 1
      %v970 = vadd.f32 %v968, %v969
      %s971 = scalar_lea.vmem %s3, 16
      %v972 = vld [vmem:[%s971] sm:$0xff]
      %v973 = vld [vmem:[%s971 + $0x8] sm:$0xff]
      %v974 = vmul.f32 %v881, %v972
      %v975 = vmul.f32 %v882, %v973
      %v976 = vmul.f32 %v883, %v972
      %v977 = vmul.f32 %v884, %v973
      %v978 = vmul.f32 %v885, %v972
      %v979 = vmul.f32 %v886, %v973
      %v980 = vmul.f32 %v887, %v972
      %v981 = vmul.f32 %v888, %v973
      %v982 = vmul.f32 %v889, %v972
      %v983 = vmul.f32 %v890, %v973
      %v984 = vmul.f32 %v891, %v972
      %v985 = vmul.f32 %v892, %v973
      %v986 = vmul.f32 %v893, %v972
      %v987 = vmul.f32 %v894, %v973
      %v988 = vmul.f32 %v895, %v972
      %v989 = vmul.f32 %v896, %v973
      %v990 = vadd.f32 %v974, %v975
      %v991 = vrot.slane %v990, 4
      %v992 = vadd.f32 %v990, %v991
      %v993 = vrot.slane %v992, 2
      %v994 = vadd.f32 %v992, %v993
      %v995 = vrot.slane %v994, 1
      %v996 = vadd.f32 %v994, %v995
      %v997 = vadd.f32 %v976, %v977
      %v998 = vrot.slane %v997, 4
      %v999 = vadd.f32 %v997, %v998
      %v1000 = vrot.slane %v999, 2
      %v1001 = vadd.f32 %v999, %v1000
      %v1002 = vrot.slane %v1001, 1
      %v1003 = vadd.f32 %v1001, %v1002
      %v1004 = vadd.f32 %v978, %v979
      %v1005 = vrot.slane %v1004, 4
      %v1006 = vadd.f32 %v1004, %v1005
      %v1007 = vrot.slane %v1006, 2
      %v1008 = vadd.f32 %v1006, %v1007
      %v1009 = vrot.slane %v1008, 1
      %v1010 = vadd.f32 %v1008, %v1009
      %v1011 = vadd.f32 %v980, %v981
      %v1012 = vrot.slane %v1011, 4
      %v1013 = vadd.f32 %v1011, %v1012
      %v1014 = vrot.slane %v1013, 2
      %v1015 = vadd.f32 %v1013, %v1014
      %v1016 = vrot.slane %v1015, 1
      %v1017 = vadd.f32 %v1015, %v1016
      %v1018 = vadd.f32 %v982, %v983
      %v1019 = vrot.slane %v1018, 4
      %v1020 = vadd.f32 %v1018, %v1019
      %v1021 = vrot.slane %v1020, 2
      %v1022 = vadd.f32 %v1020, %v1021
      %v1023 = vrot.slane %v1022, 1
      %v1024 = vadd.f32 %v1022, %v1023
      %v1025 = vadd.f32 %v984, %v985
      %v1026 = vrot.slane %v1025, 4
      %v1027 = vadd.f32 %v1025, %v1026
      %v1028 = vrot.slane %v1027, 2
      %v1029 = vadd.f32 %v1027, %v1028
      %v1030 = vrot.slane %v1029, 1
      %v1031 = vadd.f32 %v1029, %v1030
      %v1032 = vadd.f32 %v986, %v987
      %v1033 = vrot.slane %v1032, 4
      %v1034 = vadd.f32 %v1032, %v1033
      %v1035 = vrot.slane %v1034, 2
      %v1036 = vadd.f32 %v1034, %v1035
      %v1037 = vrot.slane %v1036, 1
      %v1038 = vadd.f32 %v1036, %v1037
      %v1039 = vadd.f32 %v988, %v989
      %v1040 = vrot.slane %v1039, 4
      %v1041 = vadd.f32 %v1039, %v1040
      %v1042 = vrot.slane %v1041, 2
      %v1043 = vadd.f32 %v1041, %v1042
      %v1044 = vrot.slane %v1043, 1
      %v1045 = vadd.f32 %v1043, %v1044
      %vm1054 = vcmask 1041409
      %v1055 = vsel %vm1054, %v928, %v921
      %vm1056 = vcmask 1042434
      %v1057 = vsel %vm1056, %v935, %v1055
      %vm1058 = vcmask 1043459
      %v1059 = vsel %vm1058, %v942, %v1057
      %vm1060 = vcmask 1044484
      %v1061 = vsel %vm1060, %v949, %v1059
      %vm1062 = vcmask 1045509
      %v1063 = vsel %vm1062, %v956, %v1061
      %vm1064 = vcmask 1046534
      %v1065 = vsel %vm1064, %v963, %v1063
      %vm1066 = vcmask 1047559
      %v1067 = vsel %vm1066, %v970, %v1065
      %1069 = vadd.xlane.f32.xlu0 %v1067
      %v1070 = vpop.xlane.xlu0 %1069
      %v1079 = vsel %vm1054, %v1003, %v996
      %v1080 = vsel %vm1056, %v1010, %v1079
      %v1081 = vsel %vm1058, %v1017, %v1080
      %v1082 = vsel %vm1060, %v1024, %v1081
      %v1083 = vsel %vm1062, %v1031, %v1082
      %v1084 = vsel %vm1064, %v1038, %v1083
      %v1085 = vsel %vm1066, %v1045, %v1084
      %1087 = vadd.xlane.f32.xlu0 %v1085
      %v1088 = vpop.xlane.xlu0 %1087
      %v1089 = vlaneseq
      %v1090 = vand.u32 %v1089, 127
      %vm1091 = vcmp.eq.s32.totalorder %v1090, 0
      %vm1092 = vcmp.eq.s32.totalorder %v1090, 1
      %v1093 = vsel %vm1092, %v1088, 0.0
      %v1094 = vsel %vm1091, %v1070, %v1093
      %v1095 = vld [vmem:[%s4] sm:$0x1]
      %v1097 = vlaneseq
      %v1098 = vshrl.u32 %v1097, 7
      %v1099 = vsub.s32 0, %v1098
      %v1100 = vrot.slane %v1095, %v1099
      %v1102 = vadd.f32 %v1094, %v1100
      %1103 = vst [vmem:[%s227] sm:$0xff] %v1102
      %p1104 = scmp.lt.s32.totalorder %s16, 1
      %s1105 = scalar_select %p1104, %s16, 1
      %s1106 = smul.addr %s1105, 8
      %s1107 = scalar_lea.vmem %s5, %s1106
      // Predicated region
      $region41: #{forward.1} parent=39 // pred_check
        %p1108 = pneg %p144
      $region42: #{forward.1} parent=39 // pred_check_branch
        %1110 = sbr.rel (%p1108) target = $region44
      $region43: #{forward.1} parent=39 // pred_region
        _
      $region44: #{forward.1} parent=39 // pred_fallthru
        _
    $region40: #{forward.1} parent=5 // pred_fallthru
      _
    %p1111 = scmp.le.s32.totalorder 2, %s11
    // Predicated region
    $region45: #{forward.1} parent=5 // pred_check
      %p1112 = pneg %p1111
    $region46: #{forward.1} parent=5 // pred_check_branch
      %1114 = sbr.rel (%p1112) target = $region48
    $region47: #{forward.1} parent=5 // pred_region
      %s1115 = ssub.s32 %s11, 2
      // Predicated region
      $region49: #{forward.1} parent=47 // pred_check
        %p1116 = pneg %p150
      $region50: #{forward.1} parent=47 // pred_check_branch
        %1118 = sbr.rel (%p1116) target = $region52
      $region51: #{forward.1} parent=47 // pred_region
        %p1119 = scmp.lt.s32.totalorder %s17, 1
        %s1120 = scalar_select %p1119, %s17, 1
        %s1121 = smul.addr %s1120, 8
        %s1122 = scalar_lea.vmem %s5, %s1121
      $region52: #{forward.1} parent=47 // pred_fallthru
        _
    $region48: #{forward.1} parent=5 // pred_fallthru
      _
  $region6: #{forward.1} parent=0 // loop_footer
    %s15 = sadd.s32 1, %s11
  $region7: #{forward.1} parent=0 // loop_footer_branch
    %10 = sbr.rel target = $region3
  $region8: #{forward.1} parent=0 // loop_exit
    _

</llo_original>
